<compile_context>
chip_gen: v7x
topology: tpu7x:2x2x1
jax: 0.10.0
libtpu: 0.0.40
codegen_flags: <defaults>
</compile_context>

<pallas_src>
import jax
import jax.numpy as jnp
from jax import lax
from jax.experimental import pallas as pl
from jax.experimental.pallas import tpu as pltpu

_EPS = 1e-5
_TARGET_TILE_BYTES = 2 << 20      # ~2 MiB input tile: HBM-streaming sweet spot
_MAX_LANE_TILE = 8192             # lane-tile cap (multiple of 128) for huge images


def _fbn_kernel(x_ref, scale_ref, shift_ref, o_ref):
    # x_ref: (TR, TL) activation tile; scale/shift: (TR, 1) per-row f32 scalars.
    x = x_ref[...].astype(jnp.float32)
    o_ref[...] = (x * scale_ref[...] + shift_ref[...]).astype(o_ref.dtype)


def _round_up(x, m):
    return (x + m - 1) // m * m


def frozen_batch_norm_2d(x, weight, bias, running_mean, running_var):
    """x: (N, C, H, W). weight/bias/running_mean/running_var: (C,)."""
    N, C, H, W = x.shape
    NC, HW = N * C, H * W
    itemsize = jnp.dtype(x.dtype).itemsize

    # ---- fold the frozen statistics into per-channel scale/shift (f32) ----
    w = weight.astype(jnp.float32)
    b = bias.astype(jnp.float32)
    rm = running_mean.astype(jnp.float32)
    rv = running_var.astype(jnp.float32)
    scale_c = w * lax.rsqrt(rv + _EPS)            # (C,)
    shift_c = b - rm * scale_c                    # (C,)

    # row index = n*C + c  ->  tile per-channel values to per-row (NC, 1)
    scale_r = jnp.tile(scale_c, (N,)).reshape(NC, 1)
    shift_r = jnp.tile(shift_c, (N,)).reshape(NC, 1)

    # ---- lane-dense view: (N*C, H*W); no padding, no extra HBM passes ----
    x2 = x.reshape(NC, HW)

    # ---- tile selection: ~2 MiB x-tiles, 2-D grid for large images ----
    if HW * itemsize <= _TARGET_TILE_BYTES:
        tl = HW                                    # full lane extent (always legal)
    else:
        tl = _MAX_LANE_TILE                        # multiple of 128; ragged tail OK
    grid_l = pl.cdiv(HW, tl)

    rows_per_tile = max(_TARGET_TILE_BYTES // (tl * itemsize), 1)
    tr = _round_up(rows_per_tile, 8)
    if tr >= NC:
        tr = NC                                    # full row extent (always legal)
    grid_r = pl.cdiv(NC, tr)

    # Keep >= 2 parallel grid steps when there is enough work, so both v7x
    # TensorCores (and megacore sharding in general) get a share.
    if grid_r * grid_l == 1 and NC >= 16:
        tr = _round_up(pl.cdiv(NC, 2), 8)
        grid_r = pl.cdiv(NC, tr)

    x_spec = pl.BlockSpec((tr, tl), lambda i, j: (i, j))
    p_spec = pl.BlockSpec((tr, 1), lambda i, j: (i, 0))

    # in-tile + out-tile, double-buffered, plus headroom; capped well under the
    # v7x 64 MiB physical VMEM.
    tile_bytes = tr * tl * itemsize
    vmem_limit = int(min(max(6 * tile_bytes, 16 << 20), 48 << 20))

    out = pl.pallas_call(
        _fbn_kernel,
        out_shape=jax.ShapeDtypeStruct((NC, HW), x.dtype),
        grid=(grid_r, grid_l),
        in_specs=[x_spec, p_spec, p_spec],
        out_specs=x_spec,
        compiler_params=pltpu.CompilerParams(
            dimension_semantics=("parallel", "parallel"),
            vmem_limit_bytes=vmem_limit),
        cost_estimate=pl.CostEstimate(
            flops=2 * NC * HW,
            transcendentals=0,
            bytes_accessed=2 * NC * HW * itemsize + 2 * NC * 4),
    )(x2, scale_r, shift_r)

    return out.reshape(N, C, H, W)


def frozen_batch_norm_2d_ref(x, weight, bias, running_mean, running_var):
    w = weight.reshape(1, -1, 1, 1)
    b = bias.reshape(1, -1, 1, 1)
    rv = running_var.reshape(1, -1, 1, 1)
    rm = running_mean.reshape(1, -1, 1, 1)
    scale = w * lax.rsqrt(rv + _EPS)
    return x * scale + (b - rm * scale)


if __name__ == "__main__":
    key = jax.random.PRNGKey(0)
    k_x, k_w, k_b, k_m, k_v = jax.random.split(key, 5)

    N, C, H, W = 2, 4, 16, 16
    x = jax.random.normal(k_x, (N, C, H, W), dtype=jnp.float32)

    # Deterministic "frozen" parameters (module __init__ shapes: (C,) each).
    weight = jnp.ones((C,), jnp.float32) + 0.1 * jax.random.normal(k_w, (C,))
    bias = 0.1 * jax.random.normal(k_b, (C,))
    running_mean = 0.5 * jax.random.normal(k_m, (C,))
    running_var = jnp.abs(jax.random.normal(k_v, (C,))) + 0.5

    y = jax.block_until_ready(
        frozen_batch_norm_2d(x, weight, bias, running_mean, running_var))

    y_ref = frozen_batch_norm_2d_ref(x, weight, bias, running_mean, running_var)
    assert y.shape == (N, C, H, W)
    assert jnp.allclose(y, y_ref, atol=1e-5, rtol=1e-5), "mismatch vs reference"

    print("KERNEL_OK")
</pallas_src>

<mosaic_0001>
module attributes {stable_mosaic.version = 11 : i64} {
  func.func @_fbn_kernel(%arg0: i32, %arg1: i32, %arg2: memref<8x256xf32, #tpu.memory_space<vmem>>, %arg3: memref<8x1xf32, #tpu.memory_space<vmem>>, %arg4: memref<8x1xf32, #tpu.memory_space<vmem>>, %arg5: memref<8x256xf32, #tpu.memory_space<vmem>>) attributes {dimension_semantics = [#tpu.dimension_semantics<parallel>, #tpu.dimension_semantics<parallel>], iteration_bounds = array<i64: 1, 1>, scalar_prefetch = 0 : i64, scratch_operands = 0 : i64, tpu.core_type = #tpu.core_type<tc>, window_params = [{transform_indices = @transform_0, window_bounds = array<i64: 8, 256>}, {transform_indices = @transform_1, window_bounds = array<i64: 8, 1>}, {transform_indices = @transform_2, window_bounds = array<i64: 8, 1>}, {transform_indices = @transform_3, window_bounds = array<i64: 8, 256>}]} {
    %c0 = arith.constant 0 : index
    %c0_0 = arith.constant 0 : index
    %0 = vector.load %arg2[%c0, %c0_0] : memref<8x256xf32, #tpu.memory_space<vmem>>, vector<8x256xf32>
    %c0_1 = arith.constant 0 : index
    %c0_2 = arith.constant 0 : index
    %1 = vector.load %arg3[%c0_1, %c0_2] : memref<8x1xf32, #tpu.memory_space<vmem>>, vector<8x1xf32>
    %2 = vector.broadcast %1 : vector<8x1xf32> to vector<8x256xf32>
    %3 = arith.mulf %0, %2 : vector<8x256xf32>
    %c0_3 = arith.constant 0 : index
    %c0_4 = arith.constant 0 : index
    %4 = vector.load %arg4[%c0_3, %c0_4] : memref<8x1xf32, #tpu.memory_space<vmem>>, vector<8x1xf32>
    %5 = vector.broadcast %4 : vector<8x1xf32> to vector<8x256xf32>
    %6 = arith.addf %3, %5 : vector<8x256xf32>
    %c0_5 = arith.constant 0 : index
    %c0_6 = arith.constant 0 : index
    %7 = vector.load %arg5[%c0_5, %c0_6] : memref<8x256xf32, #tpu.memory_space<vmem>>, vector<8x256xf32>
    tpu.vector_store %arg5[%c0_5, %c0_6], %6 {strides = array<i32>} : memref<8x256xf32, #tpu.memory_space<vmem>>, vector<8x256xf32>,
    return
  }
  func.func @transform_0(%arg0: i32, %arg1: i32) -> (i32, i32) {
    %c0_i32 = arith.constant 0 : i32
    return %arg0, %arg1 : i32, i32
  }
  func.func @transform_1(%arg0: i32, %arg1: i32) -> (i32, i32) {
    %c0_i32 = arith.constant 0 : i32
    %c0_i32_0 = arith.constant 0 : i32
    return %arg0, %c0_i32 : i32, i32
  }
  func.func @transform_2(%arg0: i32, %arg1: i32) -> (i32, i32) {
    %c0_i32 = arith.constant 0 : i32
    %c0_i32_0 = arith.constant 0 : i32
    return %arg0, %c0_i32 : i32, i32
  }
  func.func @transform_3(%arg0: i32, %arg1: i32) -> (i32, i32) {
    %c0_i32 = arith.constant 0 : i32
    return %arg0, %arg1 : i32, i32
  }
}

</mosaic_0001>

<llo_original>
// kernel: tpu_custom_call.1
$region0: #{tpu_custom_call.1}
  #allocation0 [shape = 'u32[]', space=smem, size = 0x4, offset = 0x4, fixed_abs, tag = 'smem constant byte address 0x4 - core index']
  #allocation1 [shape = 'u32[144,128]{1,0:T(1,128)}', space=vmem, size = 0x12000, scoped, tag = 'internal scratch']
  %s0 = inlined_call_operand.vmem [shape: f32[8,256], index: 0, kind: input, shape index: {}]
  %s1 = inlined_call_operand.vmem [shape: f32[8,1], index: 1, kind: input, shape index: {}]
  %s2 = inlined_call_operand.vmem [shape: f32[8,1], index: 2, kind: input, shape index: {}]
  %s3 = inlined_call_operand.hbm [shape: f32[8,256], index: 3, kind: output, shape index: {}]
  %s4 = sld [smem:[#allocation0]]
  $region22: #{tpu_custom_call.1} parent=0
    _
  %s6 = ssub.s32 1, %s4
  %s7 = scalar_select 0, %s6, %s4
  $region1: #{tpu_custom_call.1} parent=0
    #allocation2 [shape = 'u8[8192]{0}', space=vmem, size = 0x2000, scoped, tag = 'output window, operand 0, single buffered']
    #allocation3 [shape = 's32[1]{0}', space=sflag, size = 0x4, scoped, tag = 'scoped memory for tpu_custom_call.1']
    %8 = vsyncpa [#allocation3], 0
    // Predicated region
    $region2: #{tpu_custom_call.1} parent=1 // pred_check
      _
    $region3: #{tpu_custom_call.1} parent=1 // pred_check_branch
      %10 = sbr.rel (0) target = $region5
    $region4: #{tpu_custom_call.1} parent=1 // pred_region
      _
    $region5: #{tpu_custom_call.1} parent=1 // pred_fallthru
      _
    // Predicated region
    $region6: #{tpu_custom_call.1} parent=1 // pred_check
      _
    $region7: #{tpu_custom_call.1} parent=1 // pred_check_branch
      %12 = sbr.rel (0) target = $region9
    $region8: #{tpu_custom_call.1} parent=1 // pred_region
      _
    $region9: #{tpu_custom_call.1} parent=1 // pred_fallthru
      _
    // Predicated region
    $region10: #{tpu_custom_call.1} parent=1 // pred_check
      _
    $region11: #{tpu_custom_call.1} parent=1 // pred_check_branch
      %14 = sbr.rel (0) target = $region13
    $region12: #{tpu_custom_call.1} parent=1 // pred_region
      _
    $region13: #{tpu_custom_call.1} parent=1 // pred_fallthru
      _
    %v15 = vld [vmem:[%s0] sm:$0xff]
    %v16 = vld [vmem:[%s0 + $0x8] sm:$0xff]
    %v17 = vld [vmem:[%s1] sm:$0xff]
    %19 = vset.pattern.permute.xlu0 0
    %20 = vperm.xlu0 %19, %v17
    %v21 = vpop.permute.xlu0 %20
    %v23 = vmul.f32 %v15, %v21
    %v24 = vmul.f32 %v16, %v21
    %v25 = vld [vmem:[%s2] sm:$0xff]
    %27 = vset.pattern.permute.xlu0 0
    %28 = vperm.xlu0 %27, %v25
    %v29 = vpop.permute.xlu0 %28
    %v31 = vadd.f32 %v23, %v29
    %v32 = vadd.f32 %v24, %v29
    %33 = vst [vmem:[#allocation2] sm:$0xff] %v31
    %34 = vst [vmem:[#allocation2 + $0x8] sm:$0xff] %v32
    // Predicated region
    $region14: #{tpu_custom_call.1} parent=1 // pred_check
      _
    $region15: #{tpu_custom_call.1} parent=1 // pred_check_branch
      %36 = sbr.rel (0) target = $region17
    $region16: #{tpu_custom_call.1} parent=1 // pred_region
      %s38 = ssub.s32 256, 256
      %39 = vsyncadd [#allocation3], %s38
      %s41 = sshll.u32 [#allocation2], 4
      %s42 = int_to_ptr.vmem [resolvable:$true] %s41
      %44 = dma.vmem_to_hbm [thread:$0]  %s42, 256, %s3, [#allocation3]
    $region17: #{tpu_custom_call.1} parent=1 // pred_fallthru
      _
    // Predicated region
    $region18: #{tpu_custom_call.1} parent=1 // pred_check
      _
    $region19: #{tpu_custom_call.1} parent=1 // pred_check_branch
      %46 = sbr.rel (0) target = $region21
    $region20: #{tpu_custom_call.1} parent=1 // pred_region
      %47 = dma.done [#allocation3], 256
    $region21: #{tpu_custom_call.1} parent=1 // pred_fallthru
      _
    %48 = vsyncpa [#allocation3], 1

</llo_original>
